<compile_context>
chip_gen: v7x
topology: tpu7x:2x2x1
jax: 0.10.0
libtpu: 0.0.40
codegen_flags: <defaults>
</compile_context>

<pallas_src>
import functools
import math

import jax
import jax.numpy as jnp
from jax.experimental import pallas as pl
from jax.experimental.pallas import tpu as pltpu

_LN_1p01 = math.log(1.01)
_UNROLL_BINS = 32                 # fully unroll the bin loop up to this count
_SENTINEL = 2.0                   # pad value: |2 - center_j| > w for every bin
_TARGET_LANES = 256               # desired lane width when packing small-F inputs
_MAX_FULL_F_BLOCK = 1024          # above this, tile the feature axis (512 lanes)
_DEFAULT_BLOCK_BYTES = 4 * 1024 * 1024   # per input buffer (double-buffered)


def _round_up(a, b):
    return -(-a // b) * b


def _hard_histogram_kernel(x_ref, o_ref, acc_ref, *, num_bins, quantiles, inv_n):
    # x_ref:   VMEM (1, tm, tl)        -- tm packed instance-rows, tl lanes
    # o_ref:   VMEM (1, num_bins, tl)  -- per-bin results (lane-dense store)
    # acc_ref: VMEM (num_bins, tl) f32 -- accumulator, persists across row tiles
    k = pl.program_id(2)

    @pl.when(k == 0)
    def _init():
        acc_ref[...] = jnp.zeros_like(acc_ref)

    x = x_ref[0].astype(jnp.float32)                      # (tm, tl)
    w = jnp.float32(1.0 / (2.0 * num_bins) + 0.001)       # bin half-width (+eps)
    ln = jnp.float32(_LN_1p01)
    inv_bins = jnp.float32(1.0 / num_bins)

    def accumulate_bin(j, center):
        d = jnp.abs(x - center)
        z = (w - d) * ln                                  # 0 < z <= w*ln(1.01) < 5e-3
        # 1.01**(w-d) = exp(z) ~= 1 + z + z^2/2 (error < 3e-8): stays on the
        # VPU instead of serializing on the single EUP transcendental slot.
        val = jnp.where(d < w, 1.0 + z * (1.0 + 0.5 * z), 0.0)
        row = acc_ref[pl.ds(j, 1), :]
        acc_ref[pl.ds(j, 1), :] = row + jnp.sum(val, axis=0, keepdims=True)

    if num_bins <= _UNROLL_BINS:
        for j in range(num_bins):                         # small & static -> unrolled
            accumulate_bin(j, jnp.float32(j + 0.5) * inv_bins)
    else:
        def body(j, carry):
            accumulate_bin(j, (j.astype(jnp.float32) + jnp.float32(0.5)) * inv_bins)
            return carry
        jax.lax.fori_loop(0, num_bins, body, jnp.int32(0))

    @pl.when(k == pl.num_programs(2) - 1)
    def _finalize():
        if quantiles:
            # prefix-sum over the bin axis, in place in the accumulator
            if num_bins <= _UNROLL_BINS:
                for j in range(1, num_bins):
                    acc_ref[pl.ds(j, 1), :] = (acc_ref[pl.ds(j, 1), :]
                                               + acc_ref[pl.ds(j - 1, 1), :])
            else:
                def body(j, run):
                    run = run + acc_ref[pl.ds(j, 1), :]
                    acc_ref[pl.ds(j, 1), :] = run
                    return run
                jax.lax.fori_loop(0, num_bins, body,
                                  jnp.zeros((1, acc_ref.shape[1]), jnp.float32))
        o_ref[0] = acc_ref[...] * jnp.float32(inv_n)      # single lane-dense store


def hard_histogram(x, *, n_features, num_bins, quantiles=False,
                   block_rows=None, block_bytes=_DEFAULT_BLOCK_BYTES):
    """Pallas implementation of HardHistogram.forward -> (B, n_features*num_bins)."""
    x = jnp.asarray(x)
    if x.ndim == 2:
        x = x[None]                                       # matches torch unsqueeze(0)
    B, N, F = x.shape
    assert F == n_features
    if not jnp.issubdtype(x.dtype, jnp.floating):
        x = x.astype(jnp.float32)
    itemsize = jnp.dtype(x.dtype).itemsize

    # ---- lane layout: pack g instances per row when F is narrow -------------
    if F >= 128:
        g = 1
        if F <= _MAX_FULL_F_BLOCK:
            tl, Fp = F, F                                 # full feature axis per block
        else:
            tl = 512
            Fp = _round_up(F, tl)                         # padded + tiled feature axis
    else:
        g = max(1, min(N, _TARGET_LANES // F))            # instances packed onto lanes
        Fp = F
        tl = g * F
    L = g * Fp
    n_f = L // tl

    # ---- row tiling: reduction over instances (trailing "arbitrary" axis) ---
    M = -(-N // g)                                        # packed rows per bag
    rows_cap = block_rows if block_rows is not None else max(
        8, (block_bytes // (tl * itemsize)) // 8 * 8)
    if M <= rows_cap:
        tm, n_k = M, 1
    else:
        tm = max(8, (rows_cap // 8) * 8)                  # sublane-aligned tiles
        n_k = -(-M // tm)
    Mp = tm * n_k

    # ---- pad with a sentinel that lands in no bin, then pack ---------------
    xp = x
    if Fp > F:
        xp = jnp.pad(xp, ((0, 0), (0, 0), (0, Fp - F)), constant_values=_SENTINEL)
    pad_n = Mp * g - N
    if pad_n > 0:
        xp = jnp.pad(xp, ((0, 0), (0, pad_n), (0, 0)), constant_values=_SENTINEL)
    xp = xp.reshape(B, Mp, L)

    kernel = functools.partial(_hard_histogram_kernel, num_bins=num_bins,
                               quantiles=quantiles, inv_n=1.0 / N)

    out = pl.pallas_call(
        kernel,
        out_shape=jax.ShapeDtypeStruct((B, num_bins, L), jnp.float32),
        grid=(B, n_f, n_k),
        in_specs=[pl.BlockSpec((1, tm, tl), lambda b, fi, ki: (b, ki, fi))],
        out_specs=pl.BlockSpec((1, num_bins, tl), lambda b, fi, ki: (b, 0, fi)),
        scratch_shapes=[pltpu.VMEM((num_bins, tl), jnp.float32)],
        compiler_params=pltpu.CompilerParams(
            dimension_semantics=("parallel", "parallel", "arbitrary")),
    )(xp)

    # ---- glue (tiny, pure XLA): un-pack lanes, drop padding, relayout -------
    out = out.reshape(B, num_bins, g, Fp).sum(axis=2)     # collapse packed instances
    out = out[:, :, :F]                                   # drop feature padding
    # (B, num_bins, F) -> (B, F, num_bins) -> (B, F*num_bins)  [index c*num_bins+j]
    return jnp.transpose(out, (0, 2, 1)).reshape(B, F * num_bins)


def _hard_histogram_ref(x, *, n_features, num_bins, quantiles=False):
    """Pure-JAX reference mirroring the PyTorch forward."""
    x = jnp.asarray(x, jnp.float32)
    if x.ndim == 2:
        x = x[None]
    B, N, F = x.shape
    centers = (jnp.arange(num_bins, dtype=jnp.float32) + 0.5) * jnp.float32(1.0 / num_bins)
    w = 1.0 / (2 * num_bins) + 0.001
    d = jnp.abs(x[..., None] - centers)                   # (B, N, F, num_bins)
    val = jnp.where(d < w, jnp.exp((w - d) * _LN_1p01), 0.0)
    out = val.mean(axis=1)                                # (B, F, num_bins)
    if quantiles:
        out = jnp.cumsum(out, axis=-1)
    return out.reshape(B, F * num_bins)


def _check(x, *, n_features, num_bins, quantiles, **kw):
    got = jax.block_until_ready(
        hard_histogram(x, n_features=n_features, num_bins=num_bins,
                       quantiles=quantiles, **kw))
    want = _hard_histogram_ref(x, n_features=n_features, num_bins=num_bins,
                               quantiles=quantiles)
    assert got.shape == want.shape
    assert jnp.allclose(got, want, atol=1e-5, rtol=1e-5), (
        float(jnp.max(jnp.abs(got - want))))


if __name__ == "__main__":
    k1, k2, k3, k4 = jax.random.split(jax.random.PRNGKey(0), 4)

    # 1) small shapes (unrolled bins, packed lanes g=16 -> 64-wide tiles)
    x1 = jax.random.uniform(k1, (2, 16, 4), dtype=jnp.float32)
    _check(x1, n_features=4, num_bins=8, quantiles=False)
    _check(x1, n_features=4, num_bins=8, quantiles=True)

    # 2) multi-step reduction over instances + sentinel padding + quantiles
    x2 = jax.random.uniform(k2, (2, 2000, 4), dtype=jnp.float32)
    _check(x2, n_features=4, num_bins=8, quantiles=True, block_rows=8)

    # 3) wide-feature path (no packing, lane-dense feature axis)
    x3 = jax.random.uniform(k3, (1, 32, 128), dtype=jnp.float32)
    _check(x3, n_features=128, num_bins=8, quantiles=False)

    # 4) large bin count -> lax.fori_loop path (accumulate + prefix sum)
    x4 = jax.random.uniform(k4, (1, 64, 4), dtype=jnp.float32)
    _check(x4, n_features=4, num_bins=40, quantiles=True)

    print("KERNEL_OK")
</pallas_src>

<mosaic_0001>
module attributes {stable_mosaic.version = 11 : i64} {
  func.func @_hard_histogram_kernel(%arg0: i32, %arg1: i32, %arg2: i32, %arg3: memref<1x1x64xf32, #tpu.memory_space<vmem>>, %arg4: memref<1x8x64xf32, #tpu.memory_space<vmem>>, %arg5: memref<8x64xf32, #tpu.memory_space<vmem>>) attributes {dimension_semantics = [#tpu.dimension_semantics<parallel>, #tpu.dimension_semantics<parallel>, #tpu.dimension_semantics<arbitrary>], iteration_bounds = array<i64: 2, 1, 1>, scalar_prefetch = 0 : i64, scratch_operands = 1 : i64, tpu.core_type = #tpu.core_type<tc>, window_params = [{transform_indices = @transform_0, window_bounds = array<i64: 1, 1, 64>}, {transform_indices = @transform_1, window_bounds = array<i64: 1, 8, 64>}]} {
    %c0_i32 = arith.constant 0 : i32
    %0 = arith.cmpi eq, %arg2, %c0_i32 : i32
    %1 = arith.extui %0 : i1 to i32
    %c0_i32_0 = arith.constant 0 : i32
    %2 = arith.cmpi ne, %1, %c0_i32_0 : i32
    scf.if %2 {
      %cst_109 = arith.constant 0.000000e+00 : f32
      %200 = vector.broadcast %cst_109 : f32 to vector<8x64xf32>
      %c0_110 = arith.constant 0 : index
      %c0_111 = arith.constant 0 : index
      %201 = vector.load %arg5[%c0_110, %c0_111] : memref<8x64xf32, #tpu.memory_space<vmem>>, vector<8x64xf32>
      tpu.vector_store %arg5[%c0_110, %c0_111], %200 {strides = array<i32>} : memref<8x64xf32, #tpu.memory_space<vmem>>, vector<8x64xf32>,
    } else {
    }
    %c0 = arith.constant 0 : index
    %c0_1 = arith.constant 0 : index
    %c0_2 = arith.constant 0 : index
    %3 = vector.load %arg3[%c0, %c0_1, %c0_2] : memref<1x1x64xf32, #tpu.memory_space<vmem>>, vector<1x1x64xf32>
    %4 = vector.shape_cast %3 : vector<1x1x64xf32> to vector<1x64xf32>
    %cst = arith.constant 5.000000e-01 : f32
    %cst_3 = arith.constant 1.250000e-01 : f32
    %5 = arith.mulf %cst, %cst_3 : f32
    %6 = vector.broadcast %5 : f32 to vector<1x64xf32>
    %7 = arith.subf %4, %6 : vector<1x64xf32>
    %8 = math.absf %7 : vector<1x64xf32>
    %cst_4 = arith.constant 6.350000e-02 : f32
    %9 = vector.broadcast %cst_4 : f32 to vector<1x64xf32>
    %10 = arith.subf %9, %8 : vector<1x64xf32>
    %cst_5 = arith.constant 0.00995033048 : f32
    %11 = vector.broadcast %cst_5 : f32 to vector<1x64xf32>
    %12 = arith.mulf %10, %11 : vector<1x64xf32>
    %cst_6 = arith.constant 6.350000e-02 : f32
    %13 = vector.broadcast %cst_6 : f32 to vector<1x64xf32>
    %14 = arith.cmpf olt, %8, %13 : vector<1x64xf32>
    %cst_7 = arith.constant 5.000000e-01 : f32
    %15 = vector.broadcast %cst_7 : f32 to vector<1x64xf32>
    %16 = arith.mulf %15, %12 : vector<1x64xf32>
    %cst_8 = arith.constant 1.000000e+00 : f32
    %17 = vector.broadcast %cst_8 : f32 to vector<1x64xf32>
    %18 = arith.addf %17, %16 : vector<1x64xf32>
    %19 = arith.mulf %12, %18 : vector<1x64xf32>
    %cst_9 = arith.constant 1.000000e+00 : f32
    %20 = vector.broadcast %cst_9 : f32 to vector<1x64xf32>
    %21 = arith.addf %20, %19 : vector<1x64xf32>
    %cst_10 = arith.constant 0.000000e+00 : f32
    %22 = vector.broadcast %cst_10 : f32 to vector<1x64xf32>
    %23 = arith.select %14, %21, %22 : vector<1x64xi1>, vector<1x64xf32>
    %c0_11 = arith.constant 0 : index
    %c0_12 = arith.constant 0 : index
    %24 = vector.load %arg5[%c0_11, %c0_12] : memref<8x64xf32, #tpu.memory_space<vmem>>, vector<1x64xf32>
    %cst_13 = arith.constant dense<0.000000e+00> : vector<64xf32>
    %25 = vector.multi_reduction <add>, %23, %cst_13 [0] : vector<1x64xf32> to vector<64xf32>
    %26 = vector.shape_cast %25 : vector<64xf32> to vector<1x64xf32>
    %27 = arith.addf %24, %26 : vector<1x64xf32>
    %c0_14 = arith.constant 0 : index
    %c0_15 = arith.constant 0 : index
    %28 = vector.load %arg5[%c0_14, %c0_15] : memref<8x64xf32, #tpu.memory_space<vmem>>, vector<1x64xf32>
    tpu.vector_store %arg5[%c0_14, %c0_15], %27 {strides = array<i32>} : memref<8x64xf32, #tpu.memory_space<vmem>>, vector<1x64xf32>,
    %cst_16 = arith.constant 1.500000e+00 : f32
    %cst_17 = arith.constant 1.250000e-01 : f32
    %29 = arith.mulf %cst_16, %cst_17 : f32
    %30 = vector.broadcast %29 : f32 to vector<1x64xf32>
    %31 = arith.subf %4, %30 : vector<1x64xf32>
    %32 = math.absf %31 : vector<1x64xf32>
    %cst_18 = arith.constant 6.350000e-02 : f32
    %33 = vector.broadcast %cst_18 : f32 to vector<1x64xf32>
    %34 = arith.subf %33, %32 : vector<1x64xf32>
    %cst_19 = arith.constant 0.00995033048 : f32
    %35 = vector.broadcast %cst_19 : f32 to vector<1x64xf32>
    %36 = arith.mulf %34, %35 : vector<1x64xf32>
    %cst_20 = arith.constant 6.350000e-02 : f32
    %37 = vector.broadcast %cst_20 : f32 to vector<1x64xf32>
    %38 = arith.cmpf olt, %32, %37 : vector<1x64xf32>
    %cst_21 = arith.constant 5.000000e-01 : f32
    %39 = vector.broadcast %cst_21 : f32 to vector<1x64xf32>
    %40 = arith.mulf %39, %36 : vector<1x64xf32>
    %cst_22 = arith.constant 1.000000e+00 : f32
    %41 = vector.broadcast %cst_22 : f32 to vector<1x64xf32>
    %42 = arith.addf %41, %40 : vector<1x64xf32>
    %43 = arith.mulf %36, %42 : vector<1x64xf32>
    %cst_23 = arith.constant 1.000000e+00 : f32
    %44 = vector.broadcast %cst_23 : f32 to vector<1x64xf32>
    %45 = arith.addf %44, %43 : vector<1x64xf32>
    %cst_24 = arith.constant 0.000000e+00 : f32
    %46 = vector.broadcast %cst_24 : f32 to vector<1x64xf32>
    %47 = arith.select %38, %45, %46 : vector<1x64xi1>, vector<1x64xf32>
    %c1 = arith.constant 1 : index
    %c0_25 = arith.constant 0 : index
    %48 = vector.load %arg5[%c1, %c0_25] : memref<8x64xf32, #tpu.memory_space<vmem>>, vector<1x64xf32>
    %cst_26 = arith.constant dense<0.000000e+00> : vector<64xf32>
    %49 = vector.multi_reduction <add>, %47, %cst_26 [0] : vector<1x64xf32> to vector<64xf32>
    %50 = vector.shape_cast %49 : vector<64xf32> to vector<1x64xf32>
    %51 = arith.addf %48, %50 : vector<1x64xf32>
    %c1_27 = arith.constant 1 : index
    %c0_28 = arith.constant 0 : index
    %52 = vector.load %arg5[%c1_27, %c0_28] : memref<8x64xf32, #tpu.memory_space<vmem>>, vector<1x64xf32>
    tpu.vector_store %arg5[%c1_27, %c0_28], %51 {strides = array<i32>} : memref<8x64xf32, #tpu.memory_space<vmem>>, vector<1x64xf32>,
    %cst_29 = arith.constant 2.500000e+00 : f32
    %cst_30 = arith.constant 1.250000e-01 : f32
    %53 = arith.mulf %cst_29, %cst_30 : f32
    %54 = vector.broadcast %53 : f32 to vector<1x64xf32>
    %55 = arith.subf %4, %54 : vector<1x64xf32>
    %56 = math.absf %55 : vector<1x64xf32>
    %cst_31 = arith.constant 6.350000e-02 : f32
    %57 = vector.broadcast %cst_31 : f32 to vector<1x64xf32>
    %58 = arith.subf %57, %56 : vector<1x64xf32>
    %cst_32 = arith.constant 0.00995033048 : f32
    %59 = vector.broadcast %cst_32 : f32 to vector<1x64xf32>
    %60 = arith.mulf %58, %59 : vector<1x64xf32>
    %cst_33 = arith.constant 6.350000e-02 : f32
    %61 = vector.broadcast %cst_33 : f32 to vector<1x64xf32>
    %62 = arith.cmpf olt, %56, %61 : vector<1x64xf32>
    %cst_34 = arith.constant 5.000000e-01 : f32
    %63 = vector.broadcast %cst_34 : f32 to vector<1x64xf32>
    %64 = arith.mulf %63, %60 : vector<1x64xf32>
    %cst_35 = arith.constant 1.000000e+00 : f32
    %65 = vector.broadcast %cst_35 : f32 to vector<1x64xf32>
    %66 = arith.addf %65, %64 : vector<1x64xf32>
    %67 = arith.mulf %60, %66 : vector<1x64xf32>
    %cst_36 = arith.constant 1.000000e+00 : f32
    %68 = vector.broadcast %cst_36 : f32 to vector<1x64xf32>
    %69 = arith.addf %68, %67 : vector<1x64xf32>
    %cst_37 = arith.constant 0.000000e+00 : f32
    %70 = vector.broadcast %cst_37 : f32 to vector<1x64xf32>
    %71 = arith.select %62, %69, %70 : vector<1x64xi1>, vector<1x64xf32>
    %c2 = arith.constant 2 : index
    %c0_38 = arith.constant 0 : index
    %72 = vector.load %arg5[%c2, %c0_38] : memref<8x64xf32, #tpu.memory_space<vmem>>, vector<1x64xf32>
    %cst_39 = arith.constant dense<0.000000e+00> : vector<64xf32>
    %73 = vector.multi_reduction <add>, %71, %cst_39 [0] : vector<1x64xf32> to vector<64xf32>
    %74 = vector.shape_cast %73 : vector<64xf32> to vector<1x64xf32>
    %75 = arith.addf %72, %74 : vector<1x64xf32>
    %c2_40 = arith.constant 2 : index
    %c0_41 = arith.constant 0 : index
    %76 = vector.load %arg5[%c2_40, %c0_41] : memref<8x64xf32, #tpu.memory_space<vmem>>, vector<1x64xf32>
    tpu.vector_store %arg5[%c2_40, %c0_41], %75 {strides = array<i32>} : memref<8x64xf32, #tpu.memory_space<vmem>>, vector<1x64xf32>,
    %cst_42 = arith.constant 3.500000e+00 : f32
    %cst_43 = arith.constant 1.250000e-01 : f32
    %77 = arith.mulf %cst_42, %cst_43 : f32
    %78 = vector.broadcast %77 : f32 to vector<1x64xf32>
    %79 = arith.subf %4, %78 : vector<1x64xf32>
    %80 = math.absf %79 : vector<1x64xf32>
    %cst_44 = arith.constant 6.350000e-02 : f32
    %81 = vector.broadcast %cst_44 : f32 to vector<1x64xf32>
    %82 = arith.subf %81, %80 : vector<1x64xf32>
    %cst_45 = arith.constant 0.00995033048 : f32
    %83 = vector.broadcast %cst_45 : f32 to vector<1x64xf32>
    %84 = arith.mulf %82, %83 : vector<1x64xf32>
    %cst_46 = arith.constant 6.350000e-02 : f32
    %85 = vector.broadcast %cst_46 : f32 to vector<1x64xf32>
    %86 = arith.cmpf olt, %80, %85 : vector<1x64xf32>
    %cst_47 = arith.constant 5.000000e-01 : f32
    %87 = vector.broadcast %cst_47 : f32 to vector<1x64xf32>
    %88 = arith.mulf %87, %84 : vector<1x64xf32>
    %cst_48 = arith.constant 1.000000e+00 : f32
    %89 = vector.broadcast %cst_48 : f32 to vector<1x64xf32>
    %90 = arith.addf %89, %88 : vector<1x64xf32>
    %91 = arith.mulf %84, %90 : vector<1x64xf32>
    %cst_49 = arith.constant 1.000000e+00 : f32
    %92 = vector.broadcast %cst_49 : f32 to vector<1x64xf32>
    %93 = arith.addf %92, %91 : vector<1x64xf32>
    %cst_50 = arith.constant 0.000000e+00 : f32
    %94 = vector.broadcast %cst_50 : f32 to vector<1x64xf32>
    %95 = arith.select %86, %93, %94 : vector<1x64xi1>, vector<1x64xf32>
    %c3 = arith.constant 3 : index
    %c0_51 = arith.constant 0 : index
    %96 = vector.load %arg5[%c3, %c0_51] : memref<8x64xf32, #tpu.memory_space<vmem>>, vector<1x64xf32>
    %cst_52 = arith.constant dense<0.000000e+00> : vector<64xf32>
    %97 = vector.multi_reduction <add>, %95, %cst_52 [0] : vector<1x64xf32> to vector<64xf32>
    %98 = vector.shape_cast %97 : vector<64xf32> to vector<1x64xf32>
    %99 = arith.addf %96, %98 : vector<1x64xf32>
    %c3_53 = arith.constant 3 : index
    %c0_54 = arith.constant 0 : index
    %100 = vector.load %arg5[%c3_53, %c0_54] : memref<8x64xf32, #tpu.memory_space<vmem>>, vector<1x64xf32>
    tpu.vector_store %arg5[%c3_53, %c0_54], %99 {strides = array<i32>} : memref<8x64xf32, #tpu.memory_space<vmem>>, vector<1x64xf32>,
    %cst_55 = arith.constant 4.500000e+00 : f32
    %cst_56 = arith.constant 1.250000e-01 : f32
    %101 = arith.mulf %cst_55, %cst_56 : f32
    %102 = vector.broadcast %101 : f32 to vector<1x64xf32>
    %103 = arith.subf %4, %102 : vector<1x64xf32>
    %104 = math.absf %103 : vector<1x64xf32>
    %cst_57 = arith.constant 6.350000e-02 : f32
    %105 = vector.broadcast %cst_57 : f32 to vector<1x64xf32>
    %106 = arith.subf %105, %104 : vector<1x64xf32>
    %cst_58 = arith.constant 0.00995033048 : f32
    %107 = vector.broadcast %cst_58 : f32 to vector<1x64xf32>
    %108 = arith.mulf %106, %107 : vector<1x64xf32>
    %cst_59 = arith.constant 6.350000e-02 : f32
    %109 = vector.broadcast %cst_59 : f32 to vector<1x64xf32>
    %110 = arith.cmpf olt, %104, %109 : vector<1x64xf32>
    %cst_60 = arith.constant 5.000000e-01 : f32
    %111 = vector.broadcast %cst_60 : f32 to vector<1x64xf32>
    %112 = arith.mulf %111, %108 : vector<1x64xf32>
    %cst_61 = arith.constant 1.000000e+00 : f32
    %113 = vector.broadcast %cst_61 : f32 to vector<1x64xf32>
    %114 = arith.addf %113, %112 : vector<1x64xf32>
    %115 = arith.mulf %108, %114 : vector<1x64xf32>
    %cst_62 = arith.constant 1.000000e+00 : f32
    %116 = vector.broadcast %cst_62 : f32 to vector<1x64xf32>
    %117 = arith.addf %116, %115 : vector<1x64xf32>
    %cst_63 = arith.constant 0.000000e+00 : f32
    %118 = vector.broadcast %cst_63 : f32 to vector<1x64xf32>
    %119 = arith.select %110, %117, %118 : vector<1x64xi1>, vector<1x64xf32>
    %c4 = arith.constant 4 : index
    %c0_64 = arith.constant 0 : index
    %120 = vector.load %arg5[%c4, %c0_64] : memref<8x64xf32, #tpu.memory_space<vmem>>, vector<1x64xf32>
    %cst_65 = arith.constant dense<0.000000e+00> : vector<64xf32>
    %121 = vector.multi_reduction <add>, %119, %cst_65 [0] : vector<1x64xf32> to vector<64xf32>
    %122 = vector.shape_cast %121 : vector<64xf32> to vector<1x64xf32>
    %123 = arith.addf %120, %122 : vector<1x64xf32>
    %c4_66 = arith.constant 4 : index
    %c0_67 = arith.constant 0 : index
    %124 = vector.load %arg5[%c4_66, %c0_67] : memref<8x64xf32, #tpu.memory_space<vmem>>, vector<1x64xf32>
    tpu.vector_store %arg5[%c4_66, %c0_67], %123 {strides = array<i32>} : memref<8x64xf32, #tpu.memory_space<vmem>>, vector<1x64xf32>,
    %cst_68 = arith.constant 5.500000e+00 : f32
    %cst_69 = arith.constant 1.250000e-01 : f32
    %125 = arith.mulf %cst_68, %cst_69 : f32
    %126 = vector.broadcast %125 : f32 to vector<1x64xf32>
    %127 = arith.subf %4, %126 : vector<1x64xf32>
    %128 = math.absf %127 : vector<1x64xf32>
    %cst_70 = arith.constant 6.350000e-02 : f32
    %129 = vector.broadcast %cst_70 : f32 to vector<1x64xf32>
    %130 = arith.subf %129, %128 : vector<1x64xf32>
    %cst_71 = arith.constant 0.00995033048 : f32
    %131 = vector.broadcast %cst_71 : f32 to vector<1x64xf32>
    %132 = arith.mulf %130, %131 : vector<1x64xf32>
    %cst_72 = arith.constant 6.350000e-02 : f32
    %133 = vector.broadcast %cst_72 : f32 to vector<1x64xf32>
    %134 = arith.cmpf olt, %128, %133 : vector<1x64xf32>
    %cst_73 = arith.constant 5.000000e-01 : f32
    %135 = vector.broadcast %cst_73 : f32 to vector<1x64xf32>
    %136 = arith.mulf %135, %132 : vector<1x64xf32>
    %cst_74 = arith.constant 1.000000e+00 : f32
    %137 = vector.broadcast %cst_74 : f32 to vector<1x64xf32>
    %138 = arith.addf %137, %136 : vector<1x64xf32>
    %139 = arith.mulf %132, %138 : vector<1x64xf32>
    %cst_75 = arith.constant 1.000000e+00 : f32
    %140 = vector.broadcast %cst_75 : f32 to vector<1x64xf32>
    %141 = arith.addf %140, %139 : vector<1x64xf32>
    %cst_76 = arith.constant 0.000000e+00 : f32
    %142 = vector.broadcast %cst_76 : f32 to vector<1x64xf32>
    %143 = arith.select %134, %141, %142 : vector<1x64xi1>, vector<1x64xf32>
    %c5 = arith.constant 5 : index
    %c0_77 = arith.constant 0 : index
    %144 = vector.load %arg5[%c5, %c0_77] : memref<8x64xf32, #tpu.memory_space<vmem>>, vector<1x64xf32>
    %cst_78 = arith.constant dense<0.000000e+00> : vector<64xf32>
    %145 = vector.multi_reduction <add>, %143, %cst_78 [0] : vector<1x64xf32> to vector<64xf32>
    %146 = vector.shape_cast %145 : vector<64xf32> to vector<1x64xf32>
    %147 = arith.addf %144, %146 : vector<1x64xf32>
    %c5_79 = arith.constant 5 : index
    %c0_80 = arith.constant 0 : index
    %148 = vector.load %arg5[%c5_79, %c0_80] : memref<8x64xf32, #tpu.memory_space<vmem>>, vector<1x64xf32>
    tpu.vector_store %arg5[%c5_79, %c0_80], %147 {strides = array<i32>} : memref<8x64xf32, #tpu.memory_space<vmem>>, vector<1x64xf32>,
    %cst_81 = arith.constant 6.500000e+00 : f32
    %cst_82 = arith.constant 1.250000e-01 : f32
    %149 = arith.mulf %cst_81, %cst_82 : f32
    %150 = vector.broadcast %149 : f32 to vector<1x64xf32>
    %151 = arith.subf %4, %150 : vector<1x64xf32>
    %152 = math.absf %151 : vector<1x64xf32>
    %cst_83 = arith.constant 6.350000e-02 : f32
    %153 = vector.broadcast %cst_83 : f32 to vector<1x64xf32>
    %154 = arith.subf %153, %152 : vector<1x64xf32>
    %cst_84 = arith.constant 0.00995033048 : f32
    %155 = vector.broadcast %cst_84 : f32 to vector<1x64xf32>
    %156 = arith.mulf %154, %155 : vector<1x64xf32>
    %cst_85 = arith.constant 6.350000e-02 : f32
    %157 = vector.broadcast %cst_85 : f32 to vector<1x64xf32>
    %158 = arith.cmpf olt, %152, %157 : vector<1x64xf32>
    %cst_86 = arith.constant 5.000000e-01 : f32
    %159 = vector.broadcast %cst_86 : f32 to vector<1x64xf32>
    %160 = arith.mulf %159, %156 : vector<1x64xf32>
    %cst_87 = arith.constant 1.000000e+00 : f32
    %161 = vector.broadcast %cst_87 : f32 to vector<1x64xf32>
    %162 = arith.addf %161, %160 : vector<1x64xf32>
    %163 = arith.mulf %156, %162 : vector<1x64xf32>
    %cst_88 = arith.constant 1.000000e+00 : f32
    %164 = vector.broadcast %cst_88 : f32 to vector<1x64xf32>
    %165 = arith.addf %164, %163 : vector<1x64xf32>
    %cst_89 = arith.constant 0.000000e+00 : f32
    %166 = vector.broadcast %cst_89 : f32 to vector<1x64xf32>
    %167 = arith.select %158, %165, %166 : vector<1x64xi1>, vector<1x64xf32>
    %c6 = arith.constant 6 : index
    %c0_90 = arith.constant 0 : index
    %168 = vector.load %arg5[%c6, %c0_90] : memref<8x64xf32, #tpu.memory_space<vmem>>, vector<1x64xf32>
    %cst_91 = arith.constant dense<0.000000e+00> : vector<64xf32>
    %169 = vector.multi_reduction <add>, %167, %cst_91 [0] : vector<1x64xf32> to vector<64xf32>
    %170 = vector.shape_cast %169 : vector<64xf32> to vector<1x64xf32>
    %171 = arith.addf %168, %170 : vector<1x64xf32>
    %c6_92 = arith.constant 6 : index
    %c0_93 = arith.constant 0 : index
    %172 = vector.load %arg5[%c6_92, %c0_93] : memref<8x64xf32, #tpu.memory_space<vmem>>, vector<1x64xf32>
    tpu.vector_store %arg5[%c6_92, %c0_93], %171 {strides = array<i32>} : memref<8x64xf32, #tpu.memory_space<vmem>>, vector<1x64xf32>,
    %cst_94 = arith.constant 7.500000e+00 : f32
    %cst_95 = arith.constant 1.250000e-01 : f32
    %173 = arith.mulf %cst_94, %cst_95 : f32
    %174 = vector.broadcast %173 : f32 to vector<1x64xf32>
    %175 = arith.subf %4, %174 : vector<1x64xf32>
    %176 = math.absf %175 : vector<1x64xf32>
    %cst_96 = arith.constant 6.350000e-02 : f32
    %177 = vector.broadcast %cst_96 : f32 to vector<1x64xf32>
    %178 = arith.subf %177, %176 : vector<1x64xf32>
    %cst_97 = arith.constant 0.00995033048 : f32
    %179 = vector.broadcast %cst_97 : f32 to vector<1x64xf32>
    %180 = arith.mulf %178, %179 : vector<1x64xf32>
    %cst_98 = arith.constant 6.350000e-02 : f32
    %181 = vector.broadcast %cst_98 : f32 to vector<1x64xf32>
    %182 = arith.cmpf olt, %176, %181 : vector<1x64xf32>
    %cst_99 = arith.constant 5.000000e-01 : f32
    %183 = vector.broadcast %cst_99 : f32 to vector<1x64xf32>
    %184 = arith.mulf %183, %180 : vector<1x64xf32>
    %cst_100 = arith.constant 1.000000e+00 : f32
    %185 = vector.broadcast %cst_100 : f32 to vector<1x64xf32>
    %186 = arith.addf %185, %184 : vector<1x64xf32>
    %187 = arith.mulf %180, %186 : vector<1x64xf32>
    %cst_101 = arith.constant 1.000000e+00 : f32
    %188 = vector.broadcast %cst_101 : f32 to vector<1x64xf32>
    %189 = arith.addf %188, %187 : vector<1x64xf32>
    %cst_102 = arith.constant 0.000000e+00 : f32
    %190 = vector.broadcast %cst_102 : f32 to vector<1x64xf32>
    %191 = arith.select %182, %189, %190 : vector<1x64xi1>, vector<1x64xf32>
    %c7 = arith.constant 7 : index
    %c0_103 = arith.constant 0 : index
    %192 = vector.load %arg5[%c7, %c0_103] : memref<8x64xf32, #tpu.memory_space<vmem>>, vector<1x64xf32>
    %cst_104 = arith.constant dense<0.000000e+00> : vector<64xf32>
    %193 = vector.multi_reduction <add>, %191, %cst_104 [0] : vector<1x64xf32> to vector<64xf32>
    %194 = vector.shape_cast %193 : vector<64xf32> to vector<1x64xf32>
    %195 = arith.addf %192, %194 : vector<1x64xf32>
    %c7_105 = arith.constant 7 : index
    %c0_106 = arith.constant 0 : index
    %196 = vector.load %arg5[%c7_105, %c0_106] : memref<8x64xf32, #tpu.memory_space<vmem>>, vector<1x64xf32>
    tpu.vector_store %arg5[%c7_105, %c0_106], %195 {strides = array<i32>} : memref<8x64xf32, #tpu.memory_space<vmem>>, vector<1x64xf32>,
    %c0_i32_107 = arith.constant 0 : i32
    %197 = arith.cmpi eq, %arg2, %c0_i32_107 : i32
    %198 = arith.extui %197 : i1 to i32
    %c0_i32_108 = arith.constant 0 : i32
    %199 = arith.cmpi ne, %198, %c0_i32_108 : i32
    scf.if %199 {
      %c0_109 = arith.constant 0 : index
      %c0_110 = arith.constant 0 : index
      %200 = vector.load %arg5[%c0_109, %c0_110] : memref<8x64xf32, #tpu.memory_space<vmem>>, vector<8x64xf32>
      %cst_111 = arith.constant 6.250000e-02 : f32
      %201 = vector.broadcast %cst_111 : f32 to vector<8x64xf32>
      %202 = arith.mulf %200, %201 : vector<8x64xf32>
      %c0_112 = arith.constant 0 : index
      %c0_113 = arith.constant 0 : index
      %c0_114 = arith.constant 0 : index
      %203 = vector.load %arg4[%c0_112, %c0_113, %c0_114] : memref<1x8x64xf32, #tpu.memory_space<vmem>>, vector<1x8x64xf32>
      %204 = vector.shape_cast %203 : vector<1x8x64xf32> to vector<8x64xf32>
      %205 = vector.shape_cast %202 : vector<8x64xf32> to vector<1x8x64xf32>
      tpu.vector_store %arg4[%c0_112, %c0_113, %c0_114], %205 {strides = array<i32>} : memref<1x8x64xf32, #tpu.memory_space<vmem>>, vector<1x8x64xf32>,
    } else {
    }
    return
  }
  func.func @transform_0(%arg0: i32, %arg1: i32, %arg2: i32) -> (i32, i32, i32) {
    %c0_i32 = arith.constant 0 : i32
    return %arg0, %arg2, %arg1 : i32, i32, i32
  }
  func.func @transform_1(%arg0: i32, %arg1: i32, %arg2: i32) -> (i32, i32, i32) {
    %c0_i32 = arith.constant 0 : i32
    %c0_i32_0 = arith.constant 0 : i32
    return %arg0, %c0_i32, %arg1 : i32, i32, i32
  }
}

</mosaic_0001>

<llo_original>
// kernel: tpu_custom_call.1
$region0: #{tpu_custom_call.1}
  #allocation0 [shape = 'u32[]', space=smem, size = 0x4, offset = 0x4, fixed_abs, tag = 'smem constant byte address 0x4 - core index']
  #allocation1 [shape = 'u32[144,128]{1,0:T(1,128)}', space=vmem, size = 0x12000, scoped, tag = 'internal scratch']
  #allocation2 [shape = 'f32[8,64]{1,0:T(8,128)}', space=vmem, size = 0x1000, scoped, tag = 'scratch operand']
  %s0 = inlined_call_operand.hbm [shape: f32[2,1,64], index: 0, kind: input, shape index: {}]
  %s1 = inlined_call_operand.hbm [shape: f32[2,8,64], index: 1, kind: output, shape index: {}]
  %s2 = sld [smem:[#allocation0]]
  $region49: #{tpu_custom_call.1} parent=0
    _
  %s4 = ssub.s32 1, %s2
  %s5 = scalar_select 0, %s4, %s2
  $region1: #{tpu_custom_call.1} parent=0
    #allocation3 [shape = 'u8[1024]{0}', space=vmem, size = 0x400, scoped, tag = 'input window, operand 0']
    #allocation4 [shape = 's32[2]{0}', space=sflag, size = 0x8, scoped, tag = 'scoped memory for tpu_custom_call.1']
    #allocation5 [shape = 's32[2]{0}', space=sflag, size = 0x8, scoped, tag = 'scoped memory for tpu_custom_call.1']
    #allocation6 [shape = 'u8[8192]{0}', space=vmem, size = 0x2000, scoped, tag = 'output window, operand 0']
    %6 = vsyncpa [#allocation4], 0
    %s7 = scalar_lea.sflag [#allocation4], 1
    %8 = vsyncpa %s7, 0
    %9 = vsyncpa [#allocation5], 0
    %s10 = scalar_lea.sflag [#allocation5], 1
    %11 = vsyncpa %s10, 0
    loop: start=0, step=1, limit=4
    $region2: #{tpu_custom_call.1} parent=1 // loop_pre_header
      _
    $region3: #{tpu_custom_call.1} parent=1 // loop_header
      %s13 = sphi 0, %s17
      %p14 = scmp.ge.s32.totalorder %s13, 4
      %s20 = sphi 0, %s39
      %s21 = sphi 0, %s35
      %s22 = sphi 0, %s31
      %s23 = sphi 0, %s20
      %s24 = sphi 0, %s21
      %s25 = sphi 0, %s22
      %s26 = sphi 0, %s23
      %s27 = sphi 0, %s24
      %s28 = sphi 0, %s25
      %s46 = sphi 0, %s48
      %s49 = sphi 0, %s46
      %s50 = sphi 0, %s49
      %s66 = sphi 0, %s50
      %s74 = sphi 0, %s76
      %s77 = sphi 0, %s74
      %s78 = sphi 0, %s77
      %s94 = sphi 0, %s78
    $region4: #{tpu_custom_call.1} parent=1 // loop_header_branch
      %16 = sbr.rel (%p14) target = $region8
    $region5: #{tpu_custom_call.1} parent=1 // loop_body
      %s18 = ssub.s32 %s13, 1
      %s19 = ssub.s32 %s13, 2
      %s29 = sadd.s32 1, %s22
      %p30 = scmp.ge.s32.totalorder %s29, 1
      %s31 = scalar_select %p30, 0, %s29
      %s32 = sadd.s32 1, %s21
      %s33 = scalar_select %p30, %s32, %s21
      %p34 = scmp.ge.s32.totalorder %s33, 1
      %s35 = scalar_select %p34, 0, %s33
      %s36 = sadd.s32 1, %s20
      %s37 = scalar_select %p34, %s36, %s20
      %p38 = scmp.ge.s32.totalorder %s37, 2
      %s39 = scalar_select %p38, 0, %s37
      %s40 = ssub.s32 %s20, %s39
      %s41 = ssub.s32 %s22, %s31
      %s42 = sor.u32 %s40, %s41
      %s43 = ssub.s32 %s21, %s35
      %s44 = sor.u32 %s42, %s43
      %p45 = scmp.eq.s32.totalorder %s44, 0
      %s47 = sadd.s32 %s46, 1
      %s48 = scalar_select %p45, %s46, %s47
      %p51 = pneg %p45
      %p52 = scmp.eq.s32.totalorder %s13, 1
      %p53 = por %p51, %p52
      %p54 = scmp.ne.s32.totalorder %s46, %s49
      %p55 = scmp.eq.s32.totalorder %s13, 0
      %p56 = por %p54, %p55
      %p57 = scmp.ne.s32.totalorder %s46, %s49
      %p58 = scmp.eq.s32.totalorder %s18, 1
      %p59 = por %p57, %p58
      %p60 = scmp.ne.s32.totalorder %s49, %s50
      %p61 = scmp.eq.s32.totalorder %s18, 0
      %p62 = por %p60, %p61
      %p63 = scmp.ne.s32.totalorder %s49, %s50
      %p64 = scmp.eq.s32.totalorder %s19, 1
      %p65 = por %p63, %p64
      %p67 = scmp.ne.s32.totalorder %s50, %s66
      %p68 = scmp.eq.s32.totalorder %s19, 0
      %p69 = por %p67, %p68
      %s70 = ssub.s32 %s20, %s39
      %s71 = ssub.s32 %s21, %s35
      %s72 = sor.u32 %s70, %s71
      %p73 = scmp.eq.s32.totalorder %s72, 0
      %s75 = sadd.s32 %s74, 1
      %s76 = scalar_select %p73, %s74, %s75
      %p79 = pneg %p73
      %p80 = scmp.eq.s32.totalorder %s13, 1
      %p81 = por %p79, %p80
      %p82 = scmp.ne.s32.totalorder %s74, %s77
      %p83 = scmp.eq.s32.totalorder %s13, 0
      %p84 = por %p82, %p83
      %p85 = scmp.ne.s32.totalorder %s74, %s77
      %p86 = scmp.eq.s32.totalorder %s18, 1
      %p87 = por %p85, %p86
      %p88 = scmp.ne.s32.totalorder %s77, %s78
      %p89 = scmp.eq.s32.totalorder %s18, 0
      %p90 = por %p88, %p89
      %p91 = scmp.ne.s32.totalorder %s77, %s78
      %p92 = scmp.eq.s32.totalorder %s19, 1
      %p93 = por %p91, %p92
      %p95 = scmp.ne.s32.totalorder %s78, %s94
      %p96 = scmp.eq.s32.totalorder %s19, 0
      %p97 = por %p95, %p96
      %p98 = scmp.le.s32.totalorder 1, %s13
      %p99 = scmp.lt.s32.totalorder %s13, 3
      %p100 = pnand %p98, %p99
      %p101 = pneg %p100
      // Predicated region
      $region9: #{tpu_custom_call.1} parent=5 // pred_check
        _
      $region10: #{tpu_custom_call.1} parent=5 // pred_check_branch
        %103 = sbr.rel (%p100) target = $region12
      $region11: #{tpu_custom_call.1} parent=5 // pred_region
        %s104 = ssub.s32 %s13, 1
      $region12: #{tpu_custom_call.1} parent=5 // pred_fallthru
        _
      %p105 = scmp.lt.s32.totalorder %s13, 2
      // Predicated region
      $region13: #{tpu_custom_call.1} parent=5 // pred_check
        %p106 = pneg %p105
      $region14: #{tpu_custom_call.1} parent=5 // pred_check_branch
        %108 = sbr.rel (%p106) target = $region16
      $region15: #{tpu_custom_call.1} parent=5 // pred_region
        // Predicated region
        $region17: #{tpu_custom_call.1} parent=15 // pred_check
          %p109 = pneg %p56
        $region18: #{tpu_custom_call.1} parent=15 // pred_check_branch
          %111 = sbr.rel (%p109) target = $region20
        $region19: #{tpu_custom_call.1} parent=15 // pred_region
          %s112 = sand.u32 %s46, 1
          %s113 = scalar_lea.sflag [#allocation4], %s112
          %s114 = sand.u32 %s46, 1
          %s115 = scalar_lea.vmem [#allocation3], %s114
          %s117 = ssub.s32 16, 16
          %118 = vsyncadd %s113, %s117
          %s119 = sadd.s32 %s21, %s22
          %s120 = sadd.s32 %s119, %s20
          %s121 = smul.addr %s120, 16
          %s122 = scalar_lea.hbm %s0, %s121
          %s124 = sshll.u32 %s115, 4
          %s125 = int_to_ptr.vmem [resolvable:$true] %s124
          %127 = dma.hbm_to_vmem [thread:$0]  %s122, 16, %s125, %s113
        $region20: #{tpu_custom_call.1} parent=15 // pred_fallthru
          _
      $region16: #{tpu_custom_call.1} parent=5 // pred_fallthru
        _
      %p128 = scmp.le.s32.totalorder 1, %s13
      %p129 = scmp.lt.s32.totalorder %s13, 3
      %p130 = pnand %p128, %p129
      %p131 = pneg %p130
      // Predicated region
      $region21: #{tpu_custom_call.1} parent=5 // pred_check
        _
      $region22: #{tpu_custom_call.1} parent=5 // pred_check_branch
        %133 = sbr.rel (%p130) target = $region24
      $region23: #{tpu_custom_call.1} parent=5 // pred_region
        %s134 = ssub.s32 %s13, 1
        %s135 = sand.u32 %s49, 1
        %s136 = scalar_lea.sflag [#allocation4], %s135
        %s137 = sand.u32 %s49, 1
        %s138 = scalar_lea.vmem [#allocation3], %s137
        // Predicated region
        $region25: #{tpu_custom_call.1} parent=23 // pred_check
          %p139 = pneg %p62
        $region26: #{tpu_custom_call.1} parent=23 // pred_check_branch
          %141 = sbr.rel (%p139) target = $region28
        $region27: #{tpu_custom_call.1} parent=23 // pred_region
          %142 = dma.done %s136, 16
        $region28: #{tpu_custom_call.1} parent=23 // pred_fallthru
          _
        %s143 = sand.u32 %s49, 1
        %s144 = scalar_lea.sflag [#allocation4], %s143
        %s145 = sand.u32 %s49, 1
        %s146 = scalar_lea.vmem [#allocation3], %s145
        %p147 = pneg %p62
        %p148 = pneg %p59
        %p149 = pneg %p90
        %p150 = pneg %p87
        %s151 = sand.u32 %s77, 1
        %s152 = scalar_lea.sflag [#allocation5], %s151
        %s153 = sand.u32 %s77, 1
        %s154 = smul.addr %s153, 8
        %s155 = scalar_lea.vmem [#allocation6], %s154
        %p156 = scmp.eq.s32.totalorder %s25, 0
        // Predicated region
        $region29: #{tpu_custom_call.1} parent=23 // pred_check
          %p157 = pneg %p156
        $region30: #{tpu_custom_call.1} parent=23 // pred_check_branch
          %159 = sbr.rel (%p157) target = $region32
        $region31: #{tpu_custom_call.1} parent=23 // pred_region
          %vm160 = vcmask 523264
          %161 = vst.msk [vmem:[#allocation2] sm:$0xff] %vm160, 0.0
        $region32: #{tpu_custom_call.1} parent=23 // pred_fallthru
          _
        %v162 = vld [vmem:[%s138] sm:$0x1]
        %v163 = vsub.f32 %v162, 0.0625
        %v164 = vand.u32 2147483647, %v163
        %v165 = vsub.f32 0.0635, %v164
        %v166 = vmul.f32 %v165, 0.0099503305
        %vm167 = vcmp.lt.f32.partialorder %v164, 0.0635
        %v168 = vmul.f32 %v166, 0.5
        %v169 = vadd.f32 %v168, 1.0
        %v170 = vmul.f32 %v166, %v169
        %v171 = vadd.f32 %v170, 1.0
        %v172 = vsel %vm167, %v171, 0.0
        %v173 = vld [vmem:[#allocation2] sm:$0x1]
        %v174 = vadd.f32 %v172, 0.0
        %v175 = vadd.f32 %v173, %v174
        %vm176 = vcmask 516096
        %177 = vst.msk [vmem:[#allocation2] sm:$0x1] %vm176, %v175
        %v178 = vsub.f32 %v162, 0.1875
        %v179 = vand.u32 2147483647, %v178
        %v180 = vsub.f32 0.0635, %v179
        %v181 = vmul.f32 %v180, 0.0099503305
        %vm182 = vcmp.lt.f32.partialorder %v179, 0.0635
        %v183 = vmul.f32 %v181, 0.5
        %v184 = vadd.f32 %v183, 1.0
        %v185 = vmul.f32 %v181, %v184
        %v186 = vadd.f32 %v185, 1.0
        %v187 = vsel %vm182, %v186, 0.0
        %v188 = vld [vmem:[#allocation2 + $0x1] sm:$0x1]
        %v189 = vadd.f32 %v187, 0.0
        %v190 = vadd.f32 %v188, %v189
        %191 = vst.msk [vmem:[#allocation2 + $0x1] sm:$0x1] %vm176, %v190
        %v192 = vsub.f32 %v162, 0.3125
        %v193 = vand.u32 2147483647, %v192
        %v194 = vsub.f32 0.0635, %v193
        %v195 = vmul.f32 %v194, 0.0099503305
        %vm196 = vcmp.lt.f32.partialorder %v193, 0.0635
        %v197 = vmul.f32 %v195, 0.5
        %v198 = vadd.f32 %v197, 1.0
        %v199 = vmul.f32 %v195, %v198
        %v200 = vadd.f32 %v199, 1.0
        %v201 = vsel %vm196, %v200, 0.0
        %v202 = vld [vmem:[#allocation2 + $0x2] sm:$0x1]
        %v203 = vadd.f32 %v201, 0.0
        %v204 = vadd.f32 %v202, %v203
        %205 = vst.msk [vmem:[#allocation2 + $0x2] sm:$0x1] %vm176, %v204
        %v206 = vsub.f32 %v162, 0.4375
        %v207 = vand.u32 2147483647, %v206
        %v208 = vsub.f32 0.0635, %v207
        %v209 = vmul.f32 %v208, 0.0099503305
        %vm210 = vcmp.lt.f32.partialorder %v207, 0.0635
        %v211 = vmul.f32 %v209, 0.5
        %v212 = vadd.f32 %v211, 1.0
        %v213 = vmul.f32 %v209, %v212
        %v214 = vadd.f32 %v213, 1.0
        %v215 = vsel %vm210, %v214, 0.0
        %v216 = vld [vmem:[#allocation2 + $0x3] sm:$0x1]
        %v217 = vadd.f32 %v215, 0.0
        %v218 = vadd.f32 %v216, %v217
        %219 = vst.msk [vmem:[#allocation2 + $0x3] sm:$0x1] %vm176, %v218
        %v220 = vsub.f32 %v162, 0.5625
        %v221 = vand.u32 2147483647, %v220
        %v222 = vsub.f32 0.0635, %v221
        %v223 = vmul.f32 %v222, 0.0099503305
        %vm224 = vcmp.lt.f32.partialorder %v221, 0.0635
        %v225 = vmul.f32 %v223, 0.5
        %v226 = vadd.f32 %v225, 1.0
        %v227 = vmul.f32 %v223, %v226
        %v228 = vadd.f32 %v227, 1.0
        %v229 = vsel %vm224, %v228, 0.0
        %v230 = vld [vmem:[#allocation2 + $0x4] sm:$0x1]
        %v231 = vadd.f32 %v229, 0.0
        %v232 = vadd.f32 %v230, %v231
        %233 = vst.msk [vmem:[#allocation2 + $0x4] sm:$0x1] %vm176, %v232
        %v234 = vsub.f32 %v162, 0.6875
        %v235 = vand.u32 2147483647, %v234
        %v236 = vsub.f32 0.0635, %v235
        %v237 = vmul.f32 %v236, 0.0099503305
        %vm238 = vcmp.lt.f32.partialorder %v235, 0.0635
        %v239 = vmul.f32 %v237, 0.5
        %v240 = vadd.f32 %v239, 1.0
        %v241 = vmul.f32 %v237, %v240
        %v242 = vadd.f32 %v241, 1.0
        %v243 = vsel %vm238, %v242, 0.0
        %v244 = vld [vmem:[#allocation2 + $0x5] sm:$0x1]
        %v245 = vadd.f32 %v243, 0.0
        %v246 = vadd.f32 %v244, %v245
        %247 = vst.msk [vmem:[#allocation2 + $0x5] sm:$0x1] %vm176, %v246
        %v248 = vsub.f32 %v162, 0.8125
        %v249 = vand.u32 2147483647, %v248
        %v250 = vsub.f32 0.0635, %v249
        %v251 = vmul.f32 %v250, 0.0099503305
        %vm252 = vcmp.lt.f32.partialorder %v249, 0.0635
        %v253 = vmul.f32 %v251, 0.5
        %v254 = vadd.f32 %v253, 1.0
        %v255 = vmul.f32 %v251, %v254
        %v256 = vadd.f32 %v255, 1.0
        %v257 = vsel %vm252, %v256, 0.0
        %v258 = vld [vmem:[#allocation2 + $0x6] sm:$0x1]
        %v259 = vadd.f32 %v257, 0.0
        %v260 = vadd.f32 %v258, %v259
        %261 = vst.msk [vmem:[#allocation2 + $0x6] sm:$0x1] %vm176, %v260
        %v262 = vsub.f32 %v162, 0.9375
        %v263 = vand.u32 2147483647, %v262
        %v264 = vsub.f32 0.0635, %v263
        %v265 = vmul.f32 %v264, 0.0099503305
        %vm266 = vcmp.lt.f32.partialorder %v263, 0.0635
        %v267 = vmul.f32 %v265, 0.5
        %v268 = vadd.f32 %v267, 1.0
        %v269 = vmul.f32 %v265, %v268
        %v270 = vadd.f32 %v269, 1.0
        %v271 = vsel %vm266, %v270, 0.0
        %v272 = vld [vmem:[#allocation2 + $0x7] sm:$0x1]
        %v273 = vadd.f32 %v271, 0.0
        %v274 = vadd.f32 %v272, %v273
        %275 = vst.msk [vmem:[#allocation2 + $0x7] sm:$0x1] %vm176, %v274
        // Predicated region
        $region33: #{tpu_custom_call.1} parent=23 // pred_check
          %p276 = pneg %p156
        $region34: #{tpu_custom_call.1} parent=23 // pred_check_branch
          %278 = sbr.rel (%p276) target = $region36
        $region35: #{tpu_custom_call.1} parent=23 // pred_region
          %v279 = vld [vmem:[#allocation2] sm:$0xff]
          %v280 = vmul.f32 %v279, 0.0625
          %vm281 = vcmask 523264
          %282 = vst.msk [vmem:[%s155] sm:$0xff] %vm281, %v280
        $region36: #{tpu_custom_call.1} parent=23 // pred_fallthru
          _
        %s283 = sand.u32 %s77, 1
        %s284 = scalar_lea.sflag [#allocation5], %s283
        %s285 = sand.u32 %s77, 1
        %s286 = smul.addr %s285, 8
        %s287 = scalar_lea.vmem [#allocation6], %s286
        // Predicated region
        $region37: #{tpu_custom_call.1} parent=23 // pred_check
          %p288 = pneg %p87
        $region38: #{tpu_custom_call.1} parent=23 // pred_check_branch
          %290 = sbr.rel (%p288) target = $region40
        $region39: #{tpu_custom_call.1} parent=23 // pred_region
          %s292 = ssub.s32 128, 128
          %293 = vsyncadd %s284, %s292
          %s294 = sadd.s32 %s24, %s23
          %s295 = smul.addr %s294, 128
          %s296 = scalar_lea.hbm %s1, %s295
          %s298 = sshll.u32 %s287, 4
          %s299 = int_to_ptr.vmem [resolvable:$true] %s298
          %301 = dma.vmem_to_hbm [thread:$0]  %s299, 128, %s296, %s284
        $region40: #{tpu_custom_call.1} parent=23 // pred_fallthru
          _
      $region24: #{tpu_custom_call.1} parent=5 // pred_fallthru
        _
      %p302 = scmp.le.s32.totalorder 2, %s13
      // Predicated region
      $region41: #{tpu_custom_call.1} parent=5 // pred_check
        %p303 = pneg %p302
      $region42: #{tpu_custom_call.1} parent=5 // pred_check_branch
        %305 = sbr.rel (%p303) target = $region44
      $region43: #{tpu_custom_call.1} parent=5 // pred_region
        %s306 = ssub.s32 %s13, 2
        // Predicated region
        $region45: #{tpu_custom_call.1} parent=43 // pred_check
          %p307 = pneg %p93
        $region46: #{tpu_custom_call.1} parent=43 // pred_check_branch
          %309 = sbr.rel (%p307) target = $region48
        $region47: #{tpu_custom_call.1} parent=43 // pred_region
          %s310 = sand.u32 %s78, 1
          %s311 = scalar_lea.sflag [#allocation5], %s310
          %s312 = sand.u32 %s78, 1
          %s313 = smul.addr %s312, 8
          %s314 = scalar_lea.vmem [#allocation6], %s313
          %315 = dma.done %s311, 128
        $region48: #{tpu_custom_call.1} parent=43 // pred_fallthru
          _
      $region44: #{tpu_custom_call.1} parent=5 // pred_fallthru
        _
    $region6: #{tpu_custom_call.1} parent=1 // loop_footer
      %s17 = sadd.s32 1, %s13
    $region7: #{tpu_custom_call.1} parent=1 // loop_footer_branch
      %12 = sbr.rel target = $region3
    $region8: #{tpu_custom_call.1} parent=1 // loop_exit
      _
    %316 = vsyncpa [#allocation4], 1
    %s317 = scalar_lea.sflag [#allocation4], 1
    %318 = vsyncpa %s317, 1
    %319 = vsyncpa [#allocation5], 1
    %s320 = scalar_lea.sflag [#allocation5], 1
    %321 = vsyncpa %s320, 1

</llo_original>
